<compile_context>
chip_gen: v6e
topology: v6e:2x2x1
jax: 0.10.0
libtpu: 0.0.40
codegen_flags: <defaults>
</compile_context>

<pallas_src>
from functools import partial

import jax
import jax.numpy as jnp
from jax.experimental import pallas as pl
from jax.experimental.pallas import tpu as pltpu


# ----------------------------- VMEM budgeting --------------------------------

def _vmem_limit_bytes():
    """~75% of physical VMEM, capped at 100 MiB (v5e/v6e: 128 MiB; v7x: 64 MiB/TC)."""
    try:
        cap = getattr(pltpu.get_tpu_info(), "vmem_capacity_bytes", None)
        if cap:
            return int(min(cap * 3 // 4, 100 * 1024 * 1024))
    except Exception:
        pass
    return 48 * 1024 * 1024  # safe on every generation


_VMEM_LIMIT = _vmem_limit_bytes()
_ATTN_BUDGET = min(_VMEM_LIMIT // 2, 28 * 1024 * 1024)


# ------------------------------ tile helpers ---------------------------------

def _pick_tile(dim, prefs):
    """Largest preferred tile that divides `dim`, else the full dim (always legal)."""
    for p in prefs:
        if dim % p == 0:
            return p
    return dim


def _attention_plan(batch, n_heads, seq, head_dim, budget):
    """Pick heads-per-block for the attention kernel.

    Returns (hpb, aligned).  aligned=True: per-head-block column windows of the fused
    (B*S, 3H) qkv are (8,128)-legal (hpb*head_dim % 128 == 0) and fit `budget`;
    aligned=False: fall back to full-3H column blocks with static in-kernel slices
    (tiny-model / demo path).
    """
    def fits(hpb, cols_per_ref):
        softmax = hpb * seq * seq * (4 + 4 + 2)            # f32 scores + f32 exp + bf16 probs
        qkv_io = 2 * 3 * seq * cols_per_ref * 2            # double-buffered bf16 q/k/v blocks
        out_io = 2 * seq * hpb * head_dim * 2              # double-buffered bf16 output block
        ctx_f32 = seq * hpb * head_dim * 4                 # f32 context before the store
        return softmax + qkv_io + out_io + ctx_f32 <= budget

    divisors = [h for h in range(n_heads, 0, -1) if n_heads % h == 0]
    aligned = [h for h in divisors
               if (h * head_dim) % 128 == 0 and fits(h, h * head_dim)]
    if aligned:
        # 2-TC awareness: prefer the largest hpb that still leaves >= 2 parallel blocks.
        for h in aligned:
            if batch * (n_heads // h) >= 2:
                return h, True
        return aligned[0], True
    # Small-model fallback: all heads per step, whole 3H column block per ref.
    return n_heads, False


# ----------------------------- Pallas kernels --------------------------------

def _gelu_f32(y):
    # tanh-approx GELU ("gelu_new"); HF default exact-erf gelu differs by <1e-3.
    return 0.5 * y * (1.0 + jnp.tanh(0.7978845608028654 * (y + 0.044715 * y * y * y)))


def _linear_kernel(x_ref, w_ref, b_ref, o_ref, *, activation):
    """Weight-resident matmul: bf16 MXU inputs, full-K single shot, f32 epilogue."""
    y = jnp.dot(x_ref[...].astype(jnp.bfloat16),
                w_ref[...].astype(jnp.bfloat16),
                preferred_element_type=jnp.float32)
    y = y + b_ref[...].astype(jnp.float32)
    if activation == "gelu":
        y = _gelu_f32(y)
    elif activation == "tanh":
        y = jnp.tanh(y)
    o_ref[...] = y.astype(o_ref.dtype)


def _linear_res_ln_kernel(x_ref, w_ref, b_ref, res_ref, g_ref, bb_ref, o_ref, *, eps):
    """Weight-resident matmul with fused bias + residual-add + LayerNorm epilogue.

    K is a single resident tile -> no accumulator scratch; single-pass LN variance.
    """
    y = jnp.dot(x_ref[...].astype(jnp.bfloat16),
                w_ref[...].astype(jnp.bfloat16),
                preferred_element_type=jnp.float32)
    y = y + b_ref[...].astype(jnp.float32) + res_ref[...].astype(jnp.float32)
    mean = jnp.mean(y, axis=-1, keepdims=True)
    var = jnp.maximum(jnp.mean(y * y, axis=-1, keepdims=True) - mean * mean, 0.0)
    yn = (y - mean) * jax.lax.rsqrt(var + eps)
    o_ref[...] = (yn * g_ref[...].astype(jnp.float32)
                  + bb_ref[...].astype(jnp.float32)).astype(o_ref.dtype)


def _layernorm_kernel(x_ref, g_ref, b_ref, o_ref, *, eps):
    x = x_ref[...].astype(jnp.float32)
    mean = jnp.mean(x, axis=-1, keepdims=True)
    var = jnp.maximum(jnp.mean(x * x, axis=-1, keepdims=True) - mean * mean, 0.0)
    y = (x - mean) * jax.lax.rsqrt(var + eps)
    o_ref[...] = (y * g_ref[...].astype(jnp.float32)
                  + b_ref[...].astype(jnp.float32)).astype(o_ref.dtype)


def _attn_kernel(q_ref, k_ref, v_ref, m_ref, o_ref, *, hpb, dh, q_off, k_off, v_off):
    """Attention on a (batch, head-block) window of the fused QKV.

    q/k/v refs are (S, cols) windows of the (B*S, 3H) qkv tensor (cols == hpb*dh in
    the aligned case, 3H in the fallback).  The 1/sqrt(dh) scale is pre-folded into
    the Q weights.  Output is written lane-dense as (S, hpb*dh).
    """
    S = q_ref.shape[0]
    q_all = q_ref[...].astype(jnp.bfloat16)
    k_all = k_ref[...].astype(jnp.bfloat16)
    v_all = v_ref[...].astype(jnp.bfloat16)
    bias = jnp.broadcast_to(m_ref[...].astype(jnp.float32), (S, S))  # hoisted broadcast

    ctxs = []
    for h in range(hpb):                                   # static per-head loop
        qh = q_all[:, q_off + h * dh: q_off + (h + 1) * dh]           # (S, dh)
        kh = k_all[:, k_off + h * dh: k_off + (h + 1) * dh]
        vh = v_all[:, v_off + h * dh: v_off + (h + 1) * dh]
        # scores = qh @ kh.T  (contract last dims; no explicit transpose)
        s = jax.lax.dot_general(qh, kh, (((1,), (1,)), ((), ())),
                                preferred_element_type=jnp.float32)   # (S, S)
        s = s + bias
        s = s - jnp.max(s, axis=-1, keepdims=True)
        p = jnp.exp(s)
        p = p * pl.reciprocal(jnp.sum(p, axis=-1, keepdims=True), approx=True)
        ctxs.append(jnp.dot(p.astype(jnp.bfloat16), vh,
                            preferred_element_type=jnp.float32))      # (S, dh)
    ctx = ctxs[0] if hpb == 1 else jnp.concatenate(ctxs, axis=-1)     # (S, hpb*dh)
    o_ref[...] = ctx.astype(o_ref.dtype)


def _pooler_cls_kernel(x_ref, wp_ref, bp_ref, wc_ref, bc_ref, o_ref):
    """Fused pooler (tanh dense on CLS) + 1-unit classifier head."""
    x = x_ref[...].astype(jnp.bfloat16)                               # (tb, H)
    pooled = jnp.dot(x, wp_ref[...].astype(jnp.bfloat16),
                     preferred_element_type=jnp.float32) + bp_ref[...].astype(jnp.float32)
    pooled = jnp.tanh(pooled)
    logits = jnp.dot(pooled.astype(jnp.bfloat16), wc_ref[...].astype(jnp.bfloat16),
                     preferred_element_type=jnp.float32) + bc_ref[...].astype(jnp.float32)
    o_ref[...] = logits.astype(o_ref.dtype)


# -------------------------------- wrappers ------------------------------------

def linear(x, w, b, activation=None, out_dtype=jnp.bfloat16):
    """x: (M, K) bf16/f32, w: (K, N) bf16, b: (N,) f32 -> (M, N) out_dtype.

    Weight-resident: K is never tiled; N kept whole when <= 4096 (all BERT-base Ns).
    """
    M, K = x.shape
    N = w.shape[1]
    tm = _pick_tile(M, (512, 256, 128))
    tn = N if N <= 4096 else _pick_tile(N, (2048, 1024, 512, 256, 128))
    grid = (M // tm, N // tn)
    return pl.pallas_call(
        partial(_linear_kernel, activation=activation),
        out_shape=jax.ShapeDtypeStruct((M, N), out_dtype),
        grid_spec=pltpu.PrefetchScalarGridSpec(
            num_scalar_prefetch=0,
            grid=grid,
            in_specs=[
                pl.BlockSpec((tm, K), lambda i, j: (i, 0)),
                pl.BlockSpec((K, tn), lambda i, j: (0, j)),   # weight resident over M
                pl.BlockSpec((1, tn), lambda i, j: (0, j)),
            ],
            out_specs=pl.BlockSpec((tm, tn), lambda i, j: (i, j)),
        ),
        compiler_params=pltpu.CompilerParams(
            dimension_semantics=("parallel", "parallel"),
            vmem_limit_bytes=_VMEM_LIMIT),
    )(x, w, b.reshape(1, N))


def linear_res_ln(x, w, b, residual, gamma, beta, eps=1e-12, out_dtype=jnp.bfloat16):
    """(x @ w + b + residual) -> LayerNorm, fused.  K and N kept whole per tile."""
    M, K = x.shape
    N = w.shape[1]
    tm = _pick_tile(M, (512, 256, 128))
    grid = (M // tm,)
    return pl.pallas_call(
        partial(_linear_res_ln_kernel, eps=eps),
        out_shape=jax.ShapeDtypeStruct((M, N), out_dtype),
        grid_spec=pltpu.PrefetchScalarGridSpec(
            num_scalar_prefetch=0,
            grid=grid,
            in_specs=[
                pl.BlockSpec((tm, K), lambda i: (i, 0)),
                pl.BlockSpec((K, N), lambda i: (0, 0)),       # weight resident
                pl.BlockSpec((1, N), lambda i: (0, 0)),
                pl.BlockSpec((tm, N), lambda i: (i, 0)),      # residual (bf16)
                pl.BlockSpec((1, N), lambda i: (0, 0)),
                pl.BlockSpec((1, N), lambda i: (0, 0)),
            ],
            out_specs=pl.BlockSpec((tm, N), lambda i: (i, 0)),
        ),
        compiler_params=pltpu.CompilerParams(
            dimension_semantics=("parallel",),
            vmem_limit_bytes=_VMEM_LIMIT),
    )(x, w, b.reshape(1, N), residual, gamma.reshape(1, N), beta.reshape(1, N))


def layernorm(x, gamma, beta, eps=1e-12, out_dtype=jnp.bfloat16):
    """Standalone LayerNorm (embeddings only), bf16 output."""
    M, D = x.shape
    tm = _pick_tile(M, (512, 256, 128))
    return pl.pallas_call(
        partial(_layernorm_kernel, eps=eps),
        out_shape=jax.ShapeDtypeStruct((M, D), out_dtype),
        grid_spec=pltpu.PrefetchScalarGridSpec(
            num_scalar_prefetch=0,
            grid=(M // tm,),
            in_specs=[
                pl.BlockSpec((tm, D), lambda i: (i, 0)),
                pl.BlockSpec((1, D), lambda i: (0, 0)),
                pl.BlockSpec((1, D), lambda i: (0, 0)),
            ],
            out_specs=pl.BlockSpec((tm, D), lambda i: (i, 0)),
        ),
        compiler_params=pltpu.CompilerParams(
            dimension_semantics=("parallel",),
            vmem_limit_bytes=_VMEM_LIMIT),
    )(x, gamma.reshape(1, D), beta.reshape(1, D))


def attention_fused(qkv, mask, n_heads, head_dim):
    """qkv: (B*S, 3H) bf16 (fused, heads consecutive within each of Q|K|V),
    mask: (B, 1, S) additive f32 -> context (B*S, H) bf16, lane-dense.

    Head split/merge and the Q/K/V slicing are expressed purely via BlockSpec
    index_maps (aligned case) or static in-kernel slices (tiny-model fallback);
    no XLA-side transposes or slices of the activations.
    """
    M, three_h = qkv.shape
    H = n_heads * head_dim
    B, _, S = mask.shape
    assert M == B * S and three_h == 3 * H

    hpb, aligned = _attention_plan(B, n_heads, S, head_dim, _ATTN_BUDGET)
    nblk = n_heads // hpb
    cols_out = hpb * head_dim

    if aligned:
        cols_in = cols_out
        q_spec = pl.BlockSpec((S, cols_in), lambda b, j: (b, j))
        k_spec = pl.BlockSpec((S, cols_in), lambda b, j: (b, nblk + j))
        v_spec = pl.BlockSpec((S, cols_in), lambda b, j: (b, 2 * nblk + j))
        offs = (0, 0, 0)
    else:
        cols_in = three_h
        q_spec = pl.BlockSpec((S, cols_in), lambda b, j: (b, 0))
        k_spec = pl.BlockSpec((S, cols_in), lambda b, j: (b, 0))
        v_spec = pl.BlockSpec((S, cols_in), lambda b, j: (b, 0))
        offs = (0, H, 2 * H)

    mask_spec = pl.BlockSpec((pl.Squeezed(), 1, S), lambda b, j: (b, 0, 0))

    return pl.pallas_call(
        partial(_attn_kernel, hpb=hpb, dh=head_dim,
                q_off=offs[0], k_off=offs[1], v_off=offs[2]),
        out_shape=jax.ShapeDtypeStruct((M, H), jnp.bfloat16),
        grid_spec=pltpu.PrefetchScalarGridSpec(
            num_scalar_prefetch=0,
            grid=(B, nblk),
            in_specs=[q_spec, k_spec, v_spec, mask_spec],
            out_specs=pl.BlockSpec((S, cols_out), lambda b, j: (b, j)),
        ),
        compiler_params=pltpu.CompilerParams(
            dimension_semantics=("parallel", "parallel"),
            vmem_limit_bytes=_VMEM_LIMIT),
    )(qkv, qkv, qkv, mask)


def pooler_classifier(cls_tok, wp, bp, wc, bc):
    """cls_tok: (B, H) -> logits (B, 1) f32.  Fused tanh-pooler + classifier."""
    B, H = cls_tok.shape
    tb = _pick_tile(B, (512, 256, 128))
    return pl.pallas_call(
        _pooler_cls_kernel,
        out_shape=jax.ShapeDtypeStruct((B, 1), jnp.float32),
        grid_spec=pltpu.PrefetchScalarGridSpec(
            num_scalar_prefetch=0,
            grid=(B // tb,),
            in_specs=[
                pl.BlockSpec((tb, H), lambda i: (i, 0)),
                pl.BlockSpec((H, H), lambda i: (0, 0)),
                pl.BlockSpec((1, H), lambda i: (0, 0)),
                pl.BlockSpec((H, 1), lambda i: (0, 0)),
                pl.BlockSpec((1, 1), lambda i: (0, 0)),
            ],
            out_specs=pl.BlockSpec((tb, 1), lambda i: (i, 0)),
        ),
        compiler_params=pltpu.CompilerParams(
            dimension_semantics=("parallel",),
            vmem_limit_bytes=_VMEM_LIMIT),
    )(cls_tok, wp, bp.reshape(1, H), wc, bc.reshape(1, 1))


# ------------------------------ model config ---------------------------------

class Config:
    vocab_size = 100
    hidden_size = 32
    num_hidden_layers = 2
    num_attention_heads = 4
    intermediate_size = 64
    max_position_embeddings = 64
    type_vocab_size = 2
    layer_norm_eps = 1e-12
    hidden_dropout_prob = 0.1  # identity in eval mode


class Args:
    cl = False  # classifier branch (non-contrastive)


def init_params(key, cfg):
    H, I = cfg.hidden_size, cfg.intermediate_size
    nH = cfg.num_attention_heads
    dH = H // nH
    scale = 1.0 / (dH ** 0.5)

    def norm_f32(k, shape):
        return 0.02 * jax.random.normal(k, shape, dtype=jnp.float32)

    keys = iter(jax.random.split(key, 8 + 8 * cfg.num_hidden_layers))
    p = {
        "word_emb": norm_f32(next(keys), (cfg.vocab_size, H)),
        "pos_emb": norm_f32(next(keys), (cfg.max_position_embeddings, H)),
        "type_emb": norm_f32(next(keys), (cfg.type_vocab_size, H)),
        "emb_ln_g": jnp.ones((H,), jnp.float32),
        "emb_ln_b": jnp.zeros((H,), jnp.float32),
        "pooler_w": norm_f32(next(keys), (H, H)).astype(jnp.bfloat16),
        "pooler_b": jnp.zeros((H,), jnp.float32),
        "cls_w": norm_f32(next(keys), (H, 1)).astype(jnp.bfloat16),
        "cls_b": jnp.zeros((1,), jnp.float32),
        "layers": [],
    }
    for _ in range(cfg.num_hidden_layers):
        # Q/K/V fused into one (H, 3H) projection; 1/sqrt(dH) folded into Q cols/bias.
        wqkv = norm_f32(next(keys), (H, 3 * H))
        wqkv = wqkv.at[:, :H].multiply(scale)
        bqkv = jnp.zeros((3 * H,), jnp.float32)
        bqkv = bqkv.at[:H].multiply(scale)
        layer = {
            "wqkv": wqkv.astype(jnp.bfloat16), "bqkv": bqkv,
            "wo": norm_f32(next(keys), (H, H)).astype(jnp.bfloat16),
            "bo": jnp.zeros((H,), jnp.float32),
            "ln1_g": jnp.ones((H,), jnp.float32), "ln1_b": jnp.zeros((H,), jnp.float32),
            "wi": norm_f32(next(keys), (H, I)).astype(jnp.bfloat16),
            "bi": jnp.zeros((I,), jnp.float32),
            "wo2": norm_f32(next(keys), (I, H)).astype(jnp.bfloat16),
            "bo2": jnp.zeros((H,), jnp.float32),
            "ln2_g": jnp.ones((H,), jnp.float32), "ln2_b": jnp.zeros((H,), jnp.float32),
        }
        p["layers"].append(layer)
    return p


# ------------------------------ forward pass ----------------------------------

def bert_classifier_forward(params, cfg, args, input_ids,
                            attention_mask=None, token_type_ids=None):
    # Mirror the PyTorch view(-1, seq_len) flattening.
    S = input_ids.shape[-1]
    input_ids = input_ids.reshape(-1, S)
    B = input_ids.shape[0]
    if attention_mask is None:
        attention_mask = jnp.ones((B, S), jnp.int32)
    else:
        attention_mask = attention_mask.reshape(-1, S)
    if token_type_ids is None:
        token_type_ids = jnp.zeros((B, S), jnp.int32)
    else:
        token_type_ids = token_type_ids.reshape(-1, S)

    H = cfg.hidden_size
    nH = cfg.num_attention_heads
    dH = H // nH

    # Embeddings (gathers are glue; LayerNorm is a Pallas kernel, bf16 residual out).
    pos_ids = jnp.arange(S)
    emb = (params["word_emb"][input_ids]
           + params["pos_emb"][pos_ids][None, :, :]
           + params["type_emb"][token_type_ids])                      # (B, S, H) f32
    x = layernorm(emb.reshape(B * S, H), params["emb_ln_g"], params["emb_ln_b"],
                  eps=cfg.layer_norm_eps)                             # (B*S, H) bf16

    # Additive attention mask kept at (B, 1, S) — never broadcast per-head in HBM.
    mask = ((1.0 - attention_mask.astype(jnp.float32)) * -10000.0)[:, None, :]

    for lp in params["layers"]:
        # Fused QKV projection (scale pre-folded into Q columns), bf16 out.
        qkv = linear(x, lp["wqkv"], lp["bqkv"])                       # (B*S, 3H) bf16
        # Attention reads QKV windows via BlockSpecs; lane-dense (B*S, H) output.
        ctx = attention_fused(qkv, mask, nH, dH)                      # (B*S, H) bf16
        # Attention output projection fused with residual add + LayerNorm.
        x = linear_res_ln(ctx, lp["wo"], lp["bo"],
                          residual=x, gamma=lp["ln1_g"], beta=lp["ln1_b"],
                          eps=cfg.layer_norm_eps)                     # (B*S, H) bf16
        inter = linear(x, lp["wi"], lp["bi"], activation="gelu")      # (B*S, I) bf16
        x = linear_res_ln(inter, lp["wo2"], lp["bo2"],
                          residual=x, gamma=lp["ln2_g"], beta=lp["ln2_b"],
                          eps=cfg.layer_norm_eps)                     # (B*S, H) bf16

    # Pooler: tanh(dense(CLS token)) == outputs[1] of HF BERT.
    cls_tok = x.reshape(B, S, H)[:, 0, :]                             # (B, H) bf16

    if not args.cl:
        # dropout is identity in eval mode; pooler + classifier fused in one kernel.
        logits = pooler_classifier(cls_tok, params["pooler_w"], params["pooler_b"],
                                   params["cls_w"], params["cls_b"])  # (B, 1) f32
    else:
        logits = linear(cls_tok, params["pooler_w"], params["pooler_b"],
                        activation="tanh", out_dtype=jnp.float32)     # (B, H)
    return logits


# --------------------------------- main ---------------------------------------

if __name__ == "__main__":
    cfg = Config()
    args = Args()

    key = jax.random.PRNGKey(0)
    pkey, ikey = jax.random.split(key)
    params = init_params(pkey, cfg)

    B, S = 2, 16  # S=16 keeps bf16 sublane (16-row) alignment of the demo blocks
    input_ids = jax.random.randint(ikey, (B, S), 0, cfg.vocab_size, dtype=jnp.int32)
    attention_mask = jnp.ones((B, S), jnp.int32)
    token_type_ids = jnp.zeros((B, S), jnp.int32)

    logits = bert_classifier_forward(params, cfg, args, input_ids,
                                     attention_mask=attention_mask,
                                     token_type_ids=token_type_ids)
    logits = jax.block_until_ready(logits)
    assert logits.shape == (B, 1), logits.shape
    assert bool(jnp.all(jnp.isfinite(logits)))
    print("KERNEL_OK")
</pallas_src>

<mosaic_0001>
module attributes {stable_mosaic.version = 11 : i64} {
  func.func @_layernorm_kernel(%arg0: i32, %arg1: memref<32x32xf32, #tpu.memory_space<vmem>>, %arg2: memref<1x32xf32, #tpu.memory_space<vmem>>, %arg3: memref<1x32xf32, #tpu.memory_space<vmem>>, %arg4: memref<32x32xbf16, #tpu.memory_space<vmem>>) attributes {dimension_semantics = [#tpu.dimension_semantics<parallel>], iteration_bounds = array<i64: 1>, scalar_prefetch = 0 : i64, scratch_operands = 0 : i64, tpu.core_type = #tpu.core_type<tc>, window_params = [{transform_indices = @transform_0, window_bounds = array<i64: 32, 32>}, {pipeline_mode = #tpu.pipeline_mode<synchronous>, transform_indices = @transform_1, window_bounds = array<i64: 1, 32>}, {pipeline_mode = #tpu.pipeline_mode<synchronous>, transform_indices = @transform_2, window_bounds = array<i64: 1, 32>}, {transform_indices = @transform_3, window_bounds = array<i64: 32, 32>}]} {
    %c0 = arith.constant 0 : index
    %c0_0 = arith.constant 0 : index
    %0 = vector.load %arg1[%c0, %c0_0] : memref<32x32xf32, #tpu.memory_space<vmem>>, vector<32x32xf32>
    %cst = arith.constant dense<0.000000e+00> : vector<32xf32>
    %1 = vector.multi_reduction <add>, %0, %cst [1] : vector<32x32xf32> to vector<32xf32>
    %2 = vector.shape_cast %1 : vector<32xf32> to vector<32x1xf32>
    %cst_1 = arith.constant 3.200000e+01 : f32
    %3 = vector.broadcast %cst_1 : f32 to vector<32x1xf32>
    %4 = arith.divf %2, %3 : vector<32x1xf32>
    %5 = arith.mulf %0, %0 : vector<32x32xf32>
    %cst_2 = arith.constant dense<0.000000e+00> : vector<32xf32>
    %6 = vector.multi_reduction <add>, %5, %cst_2 [1] : vector<32x32xf32> to vector<32xf32>
    %7 = vector.shape_cast %6 : vector<32xf32> to vector<32x1xf32>
    %cst_3 = arith.constant 3.200000e+01 : f32
    %8 = vector.broadcast %cst_3 : f32 to vector<32x1xf32>
    %9 = arith.divf %7, %8 : vector<32x1xf32>
    %10 = arith.mulf %4, %4 : vector<32x1xf32>
    %11 = arith.subf %9, %10 : vector<32x1xf32>
    %cst_4 = arith.constant 0.000000e+00 : f32
    %12 = vector.broadcast %cst_4 : f32 to vector<32x1xf32>
    %13 = arith.maximumf %11, %12 : vector<32x1xf32>
    %14 = vector.broadcast %4 : vector<32x1xf32> to vector<32x32xf32>
    %15 = arith.subf %0, %14 : vector<32x32xf32>
    %cst_5 = arith.constant 9.99999996E-13 : f32
    %16 = vector.broadcast %cst_5 : f32 to vector<32x1xf32>
    %17 = arith.addf %13, %16 : vector<32x1xf32>
    %18 = math.rsqrt %17 : vector<32x1xf32>
    %19 = vector.broadcast %18 : vector<32x1xf32> to vector<32x32xf32>
    %20 = arith.mulf %15, %19 : vector<32x32xf32>
    %c0_6 = arith.constant 0 : index
    %c0_7 = arith.constant 0 : index
    %21 = vector.load %arg2[%c0_6, %c0_7] : memref<1x32xf32, #tpu.memory_space<vmem>>, vector<1x32xf32>
    %22 = vector.broadcast %21 : vector<1x32xf32> to vector<32x32xf32>
    %23 = arith.mulf %20, %22 : vector<32x32xf32>
    %c0_8 = arith.constant 0 : index
    %c0_9 = arith.constant 0 : index
    %24 = vector.load %arg3[%c0_8, %c0_9] : memref<1x32xf32, #tpu.memory_space<vmem>>, vector<1x32xf32>
    %25 = vector.broadcast %24 : vector<1x32xf32> to vector<32x32xf32>
    %26 = arith.addf %23, %25 : vector<32x32xf32>
    %27 = arith.truncf %26 : vector<32x32xf32> to vector<32x32xbf16>
    %c0_10 = arith.constant 0 : index
    %c0_11 = arith.constant 0 : index
    %28 = vector.load %arg4[%c0_10, %c0_11] : memref<32x32xbf16, #tpu.memory_space<vmem>>, vector<32x32xbf16>
    tpu.vector_store %arg4[%c0_10, %c0_11], %27 {strides = array<i32>} : memref<32x32xbf16, #tpu.memory_space<vmem>>, vector<32x32xbf16>,
    return
  }
  func.func @transform_0(%arg0: i32) -> (i32, i32) {
    %c0_i32 = arith.constant 0 : i32
    %c0_i32_0 = arith.constant 0 : i32
    return %arg0, %c0_i32 : i32, i32
  }
  func.func @transform_1(%arg0: i32) -> (i32, i32) {
    %c0_i32 = arith.constant 0 : i32
    %c0_i32_0 = arith.constant 0 : i32
    %c0_i32_1 = arith.constant 0 : i32
    return %c0_i32, %c0_i32_0 : i32, i32
  }
  func.func @transform_2(%arg0: i32) -> (i32, i32) {
    %c0_i32 = arith.constant 0 : i32
    %c0_i32_0 = arith.constant 0 : i32
    %c0_i32_1 = arith.constant 0 : i32
    return %c0_i32, %c0_i32_0 : i32, i32
  }
  func.func @transform_3(%arg0: i32) -> (i32, i32) {
    %c0_i32 = arith.constant 0 : i32
    %c0_i32_0 = arith.constant 0 : i32
    return %arg0, %c0_i32 : i32, i32
  }
}

</mosaic_0001>

<llo_original>
// kernel: tpu_custom_call.1
$region0: #{tpu_custom_call.1}
  #allocation0 [shape = 'u32[]', space=smem, size = 0x4, offset = 0x4, fixed_abs, tag = 'smem constant byte address 0x4 - core index']
  #allocation1 [shape = 'u32[144,128]{1,0:T(1,128)}', space=vmem, size = 0x12000, scoped, tag = 'internal scratch']
  %s0 = inlined_call_operand.hbm [shape: f32[32,32], index: 0, kind: input, shape index: {}]
  %s1 = inlined_call_operand.vmem [shape: f32[1,32], index: 1, kind: input, shape index: {}]
  %s2 = inlined_call_operand.vmem [shape: f32[1,32], index: 2, kind: input, shape index: {}]
  %s3 = inlined_call_operand.hbm [shape: bf16[32,32], index: 3, kind: output, shape index: {}]
  %s4 = sld [smem:[#allocation0]]
  $region26: #{tpu_custom_call.1} parent=0
    _
  %s6 = ssub.s32 1, %s4
  %s7 = scalar_select 0, %s6, %s4
  $region1: #{tpu_custom_call.1} parent=0
    #allocation2 [shape = 'u8[16384]{0}', space=vmem, size = 0x4000, scoped, tag = 'input window, operand 0, single buffered']
    #allocation3 [shape = 's32[1]{0}', space=sflag, size = 0x4, scoped, tag = 'scoped memory for tpu_custom_call.1']
    #allocation4 [shape = 's32[1]{0}', space=sflag, size = 0x4, scoped, tag = 'scoped memory for tpu_custom_call.1']
    #allocation5 [shape = 'u8[8192]{0}', space=vmem, size = 0x2000, scoped, tag = 'output window, operand 0, single buffered']
    %8 = vsyncpa [#allocation3], 0
    %9 = vsyncpa [#allocation4], 0
    // Predicated region
    $region2: #{tpu_custom_call.1} parent=1 // pred_check
      _
    $region3: #{tpu_custom_call.1} parent=1 // pred_check_branch
      %11 = sbr.rel (0) target = $region5
    $region4: #{tpu_custom_call.1} parent=1 // pred_region
      %s13 = ssub.s32 512, 512
      %14 = vsyncadd [#allocation3], %s13
      %s15 = sshll.u32 [#allocation2], 4
      %s16 = int_to_ptr.vmem [resolvable:$true] %s15
      %21 = dma.hbm_to_vmem [thread:$0]  %s0, 512, %s16, [#allocation3], 128, 128, 8
    $region5: #{tpu_custom_call.1} parent=1 // pred_fallthru
      _
    // Predicated region
    $region6: #{tpu_custom_call.1} parent=1 // pred_check
      _
    $region7: #{tpu_custom_call.1} parent=1 // pred_check_branch
      %23 = sbr.rel (0) target = $region9
    $region8: #{tpu_custom_call.1} parent=1 // pred_region
      _
    $region9: #{tpu_custom_call.1} parent=1 // pred_fallthru
      _
    // Predicated region
    $region10: #{tpu_custom_call.1} parent=1 // pred_check
      _
    $region11: #{tpu_custom_call.1} parent=1 // pred_check_branch
      %25 = sbr.rel (0) target = $region13
    $region12: #{tpu_custom_call.1} parent=1 // pred_region
      _
    $region13: #{tpu_custom_call.1} parent=1 // pred_fallthru
      _
    // Predicated region
    $region14: #{tpu_custom_call.1} parent=1 // pred_check
      _
    $region15: #{tpu_custom_call.1} parent=1 // pred_check_branch
      %27 = sbr.rel (0) target = $region17
    $region16: #{tpu_custom_call.1} parent=1 // pred_region
      %28 = dma.done [#allocation3], 512
    $region17: #{tpu_custom_call.1} parent=1 // pred_fallthru
      _
    %v29 = vld [vmem:[#allocation2] sm:$0xff]
    %v30 = vld [vmem:[#allocation2 + $0x8] sm:$0xff]
    %v31 = vld [vmem:[#allocation2 + $0x10] sm:$0xff]
    %v32 = vld [vmem:[#allocation2 + $0x18] sm:$0xff]
    %vm33 = vcmask 261120
    %v34 = vsel %vm33, %v29, 0.0
    %35 = vadd.xlane.f32.xlu0 %v34
    %v36 = vpop.xlane.xlu0 %35
    %v37 = vsel %vm33, %v30, 0.0
    %38 = vadd.xlane.f32.xlu0 %v37
    %v39 = vpop.xlane.xlu0 %38
    %v40 = vsel %vm33, %v31, 0.0
    %41 = vadd.xlane.f32.xlu0 %v40
    %v42 = vpop.xlane.xlu0 %41
    %v43 = vsel %vm33, %v32, 0.0
    %44 = vadd.xlane.f32.xlu0 %v43
    %v45 = vpop.xlane.xlu0 %44
    %v46 = vrcp.pop 32.0
    %v47 = vmul.f32 %v36, %v46
    %v48 = vmul.f32 %v39, %v46
    %v49 = vmul.f32 %v42, %v46
    %v50 = vmul.f32 %v45, %v46
    %v51 = vmul.f32 %v29, %v29
    %v52 = vmul.f32 %v30, %v30
    %v53 = vmul.f32 %v31, %v31
    %v54 = vmul.f32 %v32, %v32
    %v55 = vsel %vm33, %v51, 0.0
    %56 = vadd.xlane.f32.xlu0 %v55
    %v57 = vpop.xlane.xlu0 %56
    %v58 = vsel %vm33, %v52, 0.0
    %59 = vadd.xlane.f32.xlu0 %v58
    %v60 = vpop.xlane.xlu0 %59
    %v61 = vsel %vm33, %v53, 0.0
    %62 = vadd.xlane.f32.xlu0 %v61
    %v63 = vpop.xlane.xlu0 %62
    %v64 = vsel %vm33, %v54, 0.0
    %65 = vadd.xlane.f32.xlu0 %v64
    %v66 = vpop.xlane.xlu0 %65
    %v67 = vmul.f32 %v57, %v46
    %v68 = vmul.f32 %v60, %v46
    %v69 = vmul.f32 %v63, %v46
    %v70 = vmul.f32 %v66, %v46
    %v71 = vmul.f32 %v47, %v47
    %v72 = vmul.f32 %v48, %v48
    %v73 = vmul.f32 %v49, %v49
    %v74 = vmul.f32 %v50, %v50
    %v75 = vsub.f32 %v67, %v71
    %v76 = vsub.f32 %v68, %v72
    %v77 = vsub.f32 %v69, %v73
    %v78 = vsub.f32 %v70, %v74
    %v79 = vmax.f32 %v75, 0.0
    %v80 = vmax.f32 %v76, 0.0
    %v81 = vmax.f32 %v77, 0.0
    %v82 = vmax.f32 %v78, 0.0
    %v83 = vsub.f32 %v29, %v47
    %v84 = vsub.f32 %v30, %v48
    %v85 = vsub.f32 %v31, %v49
    %v86 = vsub.f32 %v32, %v50
    %v87 = vadd.f32 %v79, 1e-12
    %v88 = vadd.f32 %v80, 1e-12
    %v89 = vadd.f32 %v81, 1e-12
    %v90 = vadd.f32 %v82, 1e-12
    %v91 = vrsqrt.pop %v87
    %v92 = vrsqrt.pop %v88
    %v93 = vrsqrt.pop %v89
    %v94 = vrsqrt.pop %v90
    %v95 = vmul.f32 %v83, %v91
    %v96 = vmul.f32 %v84, %v92
    %v97 = vmul.f32 %v85, %v93
    %v98 = vmul.f32 %v86, %v94
    %v99 = vld [vmem:[%s1] sm:$0x1]
    %v101 = vlaneseq
    %v102 = vshrl.u32 %v101, 7
    %v103 = vsub.s32 0, %v102
    %v104 = vrot.slane %v99, %v103
    %v106 = vmul.f32 %v95, %v104
    %v107 = vmul.f32 %v96, %v104
    %v108 = vmul.f32 %v97, %v104
    %v109 = vmul.f32 %v98, %v104
    %v110 = vld [vmem:[%s2] sm:$0x1]
    %v112 = vlaneseq
    %v113 = vshrl.u32 %v112, 7
    %v114 = vsub.s32 0, %v113
    %v115 = vrot.slane %v110, %v114
    %v117 = vadd.f32 %v106, %v115
    %v118 = vadd.f32 %v107, %v115
    %v119 = vadd.f32 %v108, %v115
    %v120 = vadd.f32 %v109, %v115
    %v121 = vpack.c.bf16 %v118, %v117
    %v122 = vpack.c.bf16 %v120, %v119
    %v125 = vunpack.c.l.b16 %v121
    %v126 = vunpack.c.h.b16 %v121
    %v127 = vunpack.c.l.b16 %v122
    %v128 = vunpack.c.h.b16 %v122
    %v129 = vpack.c.b16 %v125, %v125
    %v130 = vpack.c.b16 %v126, %v126
    %v131 = vpack.c.b16 %v127, %v127
    %v132 = vpack.c.b16 %v128, %v128
    %vm137 = vcmask 257024
    %138 = vst.msk [vmem:[#allocation5] sm:$0xf] %vm137, %v129
    %139 = vst.msk [vmem:[#allocation5 + $0x4] sm:$0xf] %vm137, %v130
    %140 = vst.msk [vmem:[#allocation5 + $0x8] sm:$0xf] %vm137, %v131
    %141 = vst.msk [vmem:[#allocation5 + $0xc] sm:$0xf] %vm137, %v132
    // Predicated region
    $region18: #{tpu_custom_call.1} parent=1 // pred_check
      _
    $region19: #{tpu_custom_call.1} parent=1 // pred_check_branch
      %143 = sbr.rel (0) target = $region21
    $region20: #{tpu_custom_call.1} parent=1 // pred_region
      %s145 = ssub.s32 256, 256
      %146 = vsyncadd [#allocation4], %s145
      %s147 = sshll.u32 [#allocation5], 4
      %s148 = int_to_ptr.vmem [resolvable:$true] %s147
      %153 = dma.vmem_to_hbm [thread:$0]  %s148, 256, %s3, [#allocation4], 64, 64, 4
    $region21: #{tpu_custom_call.1} parent=1 // pred_fallthru
      _
    // Predicated region
    $region22: #{tpu_custom_call.1} parent=1 // pred_check
      _
    $region23: #{tpu_custom_call.1} parent=1 // pred_check_branch
      %155 = sbr.rel (0) target = $region25
    $region24: #{tpu_custom_call.1} parent=1 // pred_region
      %156 = dma.done [#allocation4], 256
    $region25: #{tpu_custom_call.1} parent=1 // pred_fallthru
      _
    %157 = vsyncpa [#allocation3], 1
    %158 = vsyncpa [#allocation4], 1

</llo_original>
